<compile_context>
chip_gen: v5e
topology: v5e:2x2
jax: 0.10.0
libtpu: 0.0.40
codegen_flags: <defaults>
</compile_context>

<pallas_src>
import functools

import jax
import jax.numpy as jnp
from jax.experimental import pallas as pl

# ---- configuration (small synthetic shapes) --------------------------------
BATCH = 2
IN_CH = 4
SEQ_LEN = 16
POOL_FEATURES = 8
BN_EPS = 1e-3

C1, C5A, C5B, C3A, C3B, C3C = 64, 48, 64, 64, 96, 96
C_OUT = C1 + C5B + C3C + POOL_FEATURES   # 232 real output channels
C_PAD = 256                               # lane-dense padded output width
A_WIDTH = 512                             # fused 1x1 stage width (4 x 128 groups)
N_TAPS = 11                               # 5 (branch5) + 3 + 3 (branch3dbl)


# ---- Pallas kernel ----------------------------------------------------------
def _inception_a_kernel(M, L, Cin, x2_ref, wab_ref, wtaps_ref, out_ref):
    f32 = jnp.float32

    # ---- stage A: every 1x1 conv (all four branches) in ONE matmul ----------
    wa = wab_ref[0:2 * Cin, :]              # (2*Cin, 512), BN scale pre-folded
    ba = wab_ref[8:9, :]                    # (1, 512) folded BN bias
    h = jnp.dot(x2_ref[...], wa, preferred_element_type=f32)
    h = jnp.maximum(h + ba, 0.0)            # (M, 512), 128-lane-aligned groups
    t5g = h[:, 128:256]                     # [t5 (48) | 0]
    t3g = h[:, 256:384]                     # [t3 (64) | 0]

    # ---- per-tap shifted accumulation (replaces value-level im2col) ---------
    l_pos = jax.lax.broadcasted_iota(jnp.int32, (M, 128), 0) % L

    def shift_rows(t, d):
        # s[m, :] = t[m + d, :] if row m+d lies in the same batch block, else 0.
        if d == 0:
            return t
        if d > 0:
            s = jnp.concatenate([t[d:, :], jnp.zeros((d, 128), f32)], axis=0)
        else:
            s = jnp.concatenate([jnp.zeros((-d, 128), f32), t[:d, :]], axis=0)
        valid = jnp.logical_and(l_pos + d >= 0, l_pos + d < L)
        return jnp.where(valid, s, 0.0)

    def tap_conv(t, K, blk0):
        acc = None
        for k in range(K):                                  # static unrolled
            w = wtaps_ref[(blk0 + k) * 128:(blk0 + k + 1) * 128, :]
            z = jnp.dot(shift_rows(t, k - K // 2), w,
                        preferred_element_type=f32)
            acc = z if acc is None else acc + z
        return acc

    b5 = wab_ref[9:10, 0:128]
    b3b = wab_ref[9:10, 128:256]
    b3c = wab_ref[9:10, 256:384]

    y5 = jnp.maximum(tap_conv(t5g, 5, 0) + b5, 0.0)    # (M,128) = [0(64) | y5(64)]
    t3b = jnp.maximum(tap_conv(t3g, 3, 5) + b3b, 0.0)  # (M,128) = [t3b(96)| 0  ]
    y3 = jnp.maximum(tap_conv(t3b, 3, 8) + b3c, 0.0)   # (M,128) = [y3 (96)| 0  ]

    # ---- lane-dense assembly: disjoint zero-padded groups -> two adds -------
    blk0 = h[:, 0:128] + y5            # [y1(64) | y5(64)]
    blk1 = y3 + h[:, 384:512]          # [y3(96) | yp(8) | 0(24)]
    out_ref[...] = jnp.concatenate([blk0, blk1], axis=-1)


# ---- init-time parameter packing (hoisted out of the per-call path) ---------
def pack_params(params, in_channels, pool_features, seq_len):
    f32 = jnp.float32
    Cin = in_channels
    assert 2 * Cin <= 8, "packed wab layout assumes 2*Cin <= 8 rows"

    def wsc(name):  # (K, Cin_l, Cout) with BN scale folded into the Cout axis
        p = params[name]
        return p['w'] * p['s'][0][None, None, :]

    # stage-A weight (2*Cin, 512): 128-lane-aligned output groups.
    #   cols   0: 64 -> branch1 (reads x lanes)        [final]
    #   cols 128:176 -> branch5_1 intermediate t5
    #   cols 256:320 -> branch3dbl_1 intermediate t3
    #   cols 480:488 -> branch_pool conv (reads pooled lanes)  [final]
    wa = jnp.zeros((2 * Cin, A_WIDTH), f32)
    wa = wa.at[0:Cin, 0:C1].set(wsc('b1')[0])
    wa = wa.at[0:Cin, 128:128 + C5A].set(wsc('b5a')[0])
    wa = wa.at[0:Cin, 256:256 + C3A].set(wsc('b3a')[0])
    wa = wa.at[Cin:2 * Cin, 384 + C3C:384 + C3C + pool_features].set(wsc('bp')[0])

    ba = jnp.zeros((1, A_WIDTH), f32)
    ba = ba.at[:, 0:C1].set(params['b1']['b'])
    ba = ba.at[:, 128:128 + C5A].set(params['b5a']['b'])
    ba = ba.at[:, 256:256 + C3A].set(params['b3a']['b'])
    ba = ba.at[:, 384 + C3C:384 + C3C + pool_features].set(params['bp']['b'])

    # remaining (post-tap-conv) biases, packed in one 512-wide row:
    #   [ b5 @ lanes 64:128 | b3b @ lanes 128:224 | b3c @ lanes 256:352 | 0 ]
    brow = jnp.zeros((1, A_WIDTH), f32)
    brow = brow.at[:, 64:64 + C5B].set(params['b5b']['b'])
    brow = brow.at[:, 128:128 + C3B].set(params['b3b']['b'])
    brow = brow.at[:, 256:256 + C3C].set(params['b3c']['b'])

    wab = jnp.zeros((16, A_WIDTH), f32)
    wab = wab.at[0:2 * Cin, :].set(wa)
    wab = wab.at[8:9, :].set(ba)
    wab = wab.at[9:10, :].set(brow)

    # packed tap weights: 11 uniform (128, 128) blocks (BN scale folded in).
    #   blocks 0-4 : branch5_2  (rows 0:48,  cols 64:128)  -> y5 at lanes 64:128
    #   blocks 5-7 : branch3dbl_2 (rows 0:64, cols 0:96)
    #   blocks 8-10: branch3dbl_3 (rows 0:96, cols 0:96)
    wtaps = jnp.zeros((N_TAPS * 128, 128), f32)
    w5 = wsc('b5b')
    for k in range(5):
        wtaps = wtaps.at[k * 128:k * 128 + C5A, 64:64 + C5B].set(w5[k])
    w3b = wsc('b3b')
    for k in range(3):
        wtaps = wtaps.at[(5 + k) * 128:(5 + k) * 128 + C3A, 0:C3B].set(w3b[k])
    w3c = wsc('b3c')
    for k in range(3):
        wtaps = wtaps.at[(8 + k) * 128:(8 + k) * 128 + C3B, 0:C3C].set(w3c[k])

    # avg-pool reciprocal counts (count_include_pad=False), shape (1, L, 1)
    l_idx = jnp.arange(seq_len)
    counts = (3.0 - (l_idx == 0).astype(f32) - (l_idx == seq_len - 1).astype(f32))
    invc = (1.0 / counts).astype(f32).reshape(1, seq_len, 1)

    return {'wab': wab, 'wtaps': wtaps, 'invc': invc}


# ---- wrapper (per-call work: only x2 construction in XLA) -------------------
def inception_a_forward(x_ncl, packed):
    N, Cin, L = x_ncl.shape
    M = N * L
    x = jnp.transpose(x_ncl, (0, 2, 1)).astype(jnp.float32)        # (N, L, Cin)
    xp = jnp.pad(x, ((0, 0), (1, 1), (0, 0)))
    pooled = (xp[:, 0:L] + x + xp[:, 2:L + 2]) * packed['invc']    # avg pool k=3
    x2 = jnp.concatenate([x, pooled], axis=-1).reshape(M, 2 * Cin)

    out = pl.pallas_call(
        functools.partial(_inception_a_kernel, M, L, Cin),
        out_shape=jax.ShapeDtypeStruct((M, C_PAD), jnp.float32),
    )(x2, packed['wab'], packed['wtaps'])

    out_nlc = out.reshape(N, L, C_PAD)[:, :, :C_OUT]
    return jnp.transpose(out_nlc, (0, 2, 1))                       # PyTorch NCL


# ---- deterministic parameter init (folded BN) --------------------------------
def _fold_bn(gamma, beta, mean, var, eps=BN_EPS):
    scale = gamma / jnp.sqrt(var + eps)
    bias = beta - mean * scale
    return scale.reshape(1, -1), bias.reshape(1, -1)


def init_params(key, in_channels, pool_features):
    layers = {
        'b1':  (in_channels, C1, 1),
        'b5a': (in_channels, C5A, 1),
        'b5b': (C5A, C5B, 5),
        'b3a': (in_channels, C3A, 1),
        'b3b': (C3A, C3B, 3),
        'b3c': (C3B, C3C, 3),
        'bp':  (in_channels, pool_features, 1),
    }
    params = {}
    for name, (cin, cout, k) in layers.items():
        key, kw, kg, kb, km, kv = jax.random.split(key, 6)
        w = 0.1 * jax.random.normal(kw, (k, cin, cout), jnp.float32)  # (K, Cin, Cout)
        gamma = 1.0 + 0.1 * jax.random.normal(kg, (cout,), jnp.float32)
        beta = 0.1 * jax.random.normal(kb, (cout,), jnp.float32)
        mean = 0.1 * jax.random.normal(km, (cout,), jnp.float32)
        var = jax.random.uniform(kv, (cout,), jnp.float32, 0.5, 1.5)
        s, b = _fold_bn(gamma, beta, mean, var)
        params[name] = {'w': w, 's': s, 'b': b}
    return params


# ---- pure-JAX reference (for correctness check) -------------------------------
def _conv1d_nlc(x, w, pad):
    return jax.lax.conv_general_dilated(
        x, w, window_strides=(1,), padding=[(pad, pad)],
        dimension_numbers=('NWC', 'WIO', 'NWC'))


def _basic_conv_ref(x, p, pad):
    z = _conv1d_nlc(x, p['w'], pad)
    return jnp.maximum(z * p['s'] + p['b'], 0.0)


def inception_a_reference(x_ncl, params):
    x = jnp.transpose(x_ncl, (0, 2, 1)).astype(jnp.float32)   # NLC
    N, L, _ = x.shape

    y1 = _basic_conv_ref(x, params['b1'], 0)
    y5 = _basic_conv_ref(_basic_conv_ref(x, params['b5a'], 0), params['b5b'], 2)
    y3 = _basic_conv_ref(
        _basic_conv_ref(_basic_conv_ref(x, params['b3a'], 0), params['b3b'], 1),
        params['b3c'], 1)

    xp = jnp.pad(x, ((0, 0), (1, 1), (0, 0)))
    psum = xp[:, 0:L] + xp[:, 1:L + 1] + xp[:, 2:L + 2]
    cnt = jnp.full((L,), 3.0).at[0].set(2.0).at[-1].set(2.0)
    pooled = psum / cnt[None, :, None]
    yp = _basic_conv_ref(pooled, params['bp'], 0)

    out = jnp.concatenate([y1, y5, y3, yp], axis=-1)
    return jnp.transpose(out, (0, 2, 1))


if __name__ == "__main__":
    key = jax.random.PRNGKey(0)
    kx, kp = jax.random.split(key)
    x = jax.random.normal(kx, (BATCH, IN_CH, SEQ_LEN), jnp.float32)  # NCL (PyTorch)
    params = init_params(kp, IN_CH, POOL_FEATURES)

    # one-time packing (not in the per-call path)
    packed = pack_params(params, IN_CH, POOL_FEATURES, SEQ_LEN)

    fwd = jax.jit(inception_a_forward)
    out = jax.block_until_ready(fwd(x, packed))

    ref = inception_a_reference(x, params)
    assert out.shape == (BATCH, C_OUT, SEQ_LEN), out.shape
    max_err = float(jnp.max(jnp.abs(out - ref)))
    assert max_err < 2e-3, max_err
    print("KERNEL_OK")
</pallas_src>

<mosaic_0001>
module attributes {stable_mosaic.version = 11 : i64} {
  func.func @_inception_a_kernel(%arg0: memref<32x8xf32, #tpu.memory_space<vmem>>, %arg1: memref<16x512xf32, #tpu.memory_space<vmem>>, %arg2: memref<1408x128xf32, #tpu.memory_space<vmem>>, %arg3: memref<32x256xf32, #tpu.memory_space<vmem>>) attributes {dimension_semantics = [], scalar_prefetch = 0 : i64, scratch_operands = 0 : i64, tpu.core_type = #tpu.core_type<tc>} {
    %c0 = arith.constant 0 : index
    %c0_0 = arith.constant 0 : index
    %0 = vector.load %arg1[%c0, %c0_0] : memref<16x512xf32, #tpu.memory_space<vmem>>, vector<8x512xf32>
    %c8 = arith.constant 8 : index
    %c0_1 = arith.constant 0 : index
    %1 = vector.load %arg1[%c8, %c0_1] : memref<16x512xf32, #tpu.memory_space<vmem>>, vector<1x512xf32>
    %c0_2 = arith.constant 0 : index
    %c0_3 = arith.constant 0 : index
    %2 = vector.load %arg0[%c0_2, %c0_3] : memref<32x8xf32, #tpu.memory_space<vmem>>, vector<32x8xf32>
    %cst = arith.constant dense<0.000000e+00> : vector<32x512xf32>
    %3 = tpu.matmul %2, %0, %cst {dimension_numbers = #tpu.dot_dimension_numbers<[1], [0], [0], [1], [0, 0, 1, 1], [], []>} : vector<32x8xf32>, vector<8x512xf32>, vector<32x512xf32> -> vector<32x512xf32>
    %4 = vector.broadcast %1 : vector<1x512xf32> to vector<32x512xf32>
    %5 = arith.addf %3, %4 : vector<32x512xf32>
    %cst_4 = arith.constant 0.000000e+00 : f32
    %6 = vector.broadcast %cst_4 : f32 to vector<32x512xf32>
    %7 = arith.maximumf %5, %6 : vector<32x512xf32>
    %8 = vector.extract_strided_slice %7 {offsets = [0, 128], sizes = [32, 128], strides = [1, 1]} : vector<32x512xf32> to vector<32x128xf32>
    %9 = vector.extract_strided_slice %7 {offsets = [0, 256], sizes = [32, 128], strides = [1, 1]} : vector<32x512xf32> to vector<32x128xf32>
    %10 = tpu.iota {dimensions = array<i32: 0>} : vector<32x128xi32>
    %c16_i32 = arith.constant 16 : i32
    %c0_i32 = arith.constant 0 : i32
    %11 = arith.cmpi eq, %c16_i32, %c0_i32 : i32
    %c1_i32 = arith.constant 1 : i32
    %12 = arith.select %11, %c1_i32, %c16_i32 : i32
    %13 = vector.broadcast %12 : i32 to vector<32x128xi32>
    %14 = arith.remsi %10, %13 : vector<32x128xi32>
    %c0_i32_5 = arith.constant 0 : i32
    %15 = vector.broadcast %c0_i32_5 : i32 to vector<32x128xi32>
    %16 = arith.cmpi ne, %14, %15 : vector<32x128xi32>
    %c0_i32_6 = arith.constant 0 : i32
    %17 = vector.broadcast %c0_i32_6 : i32 to vector<32x128xi32>
    %18 = arith.cmpi slt, %14, %17 : vector<32x128xi32>
    %c0_i32_7 = arith.constant 0 : i32
    %19 = arith.cmpi slt, %12, %c0_i32_7 : i32
    %20 = vector.broadcast %19 : i1 to vector<32x128xi1>
    %21 = vector.broadcast %20 : vector<32x128xi1> to vector<32x128xi1>
    %22 = arith.xori %18, %21 : vector<32x128xi1>
    %23 = arith.andi %22, %16 : vector<32x128xi1>
    %24 = vector.broadcast %12 : i32 to vector<32x128xi32>
    %25 = arith.addi %14, %24 : vector<32x128xi32>
    %26 = arith.select %23, %25, %14 : vector<32x128xi1>, vector<32x128xi32>
    %c9 = arith.constant 9 : index
    %c0_8 = arith.constant 0 : index
    %27 = vector.load %arg1[%c9, %c0_8] : memref<16x512xf32, #tpu.memory_space<vmem>>, vector<1x128xf32>
    %c9_9 = arith.constant 9 : index
    %c128 = arith.constant 128 : index
    %28 = vector.load %arg1[%c9_9, %c128] : memref<16x512xf32, #tpu.memory_space<vmem>>, vector<1x128xf32>
    %c9_10 = arith.constant 9 : index
    %c256 = arith.constant 256 : index
    %29 = vector.load %arg1[%c9_10, %c256] : memref<16x512xf32, #tpu.memory_space<vmem>>, vector<1x128xf32>
    %c0_11 = arith.constant 0 : index
    %c0_12 = arith.constant 0 : index
    %30 = vector.load %arg2[%c0_11, %c0_12] : memref<1408x128xf32, #tpu.memory_space<vmem>>, vector<128x128xf32>
    %cst_13 = arith.constant 0.000000e+00 : f32
    %31 = vector.broadcast %cst_13 : f32 to vector<2x128xf32>
    %32 = vector.extract_strided_slice %8 {offsets = [0, 0], sizes = [30, 128], strides = [1, 1]} : vector<32x128xf32> to vector<30x128xf32>
    %33 = tpu.concatenate %31, %32 in 0 : vector<2x128xf32>, vector<30x128xf32> -> vector<32x128xf32>
    %c-2_i32 = arith.constant -2 : i32
    %34 = vector.broadcast %c-2_i32 : i32 to vector<32x128xi32>
    %35 = arith.addi %26, %34 : vector<32x128xi32>
    %c0_i32_14 = arith.constant 0 : i32
    %36 = vector.broadcast %c0_i32_14 : i32 to vector<32x128xi32>
    %37 = arith.cmpi sge, %35, %36 : vector<32x128xi32>
    %c-2_i32_15 = arith.constant -2 : i32
    %38 = vector.broadcast %c-2_i32_15 : i32 to vector<32x128xi32>
    %39 = arith.addi %26, %38 : vector<32x128xi32>
    %c16_i32_16 = arith.constant 16 : i32
    %40 = vector.broadcast %c16_i32_16 : i32 to vector<32x128xi32>
    %41 = arith.cmpi slt, %39, %40 : vector<32x128xi32>
    %42 = arith.andi %37, %41 : vector<32x128xi1>
    %cst_17 = arith.constant 0.000000e+00 : f32
    %43 = vector.broadcast %cst_17 : f32 to vector<32x128xf32>
    %44 = arith.select %42, %33, %43 : vector<32x128xi1>, vector<32x128xf32>
    %cst_18 = arith.constant dense<0.000000e+00> : vector<32x128xf32>
    %45 = tpu.matmul %44, %30, %cst_18 {dimension_numbers = #tpu.dot_dimension_numbers<[1], [0], [0], [1], [0, 0, 1, 1], [], []>} : vector<32x128xf32>, vector<128x128xf32>, vector<32x128xf32> -> vector<32x128xf32>
    %c128_19 = arith.constant 128 : index
    %c0_20 = arith.constant 0 : index
    %46 = vector.load %arg2[%c128_19, %c0_20] : memref<1408x128xf32, #tpu.memory_space<vmem>>, vector<128x128xf32>
    %cst_21 = arith.constant 0.000000e+00 : f32
    %47 = vector.broadcast %cst_21 : f32 to vector<1x128xf32>
    %48 = vector.extract_strided_slice %8 {offsets = [0, 0], sizes = [31, 128], strides = [1, 1]} : vector<32x128xf32> to vector<31x128xf32>
    %49 = tpu.concatenate %47, %48 in 0 : vector<1x128xf32>, vector<31x128xf32> -> vector<32x128xf32>
    %c-1_i32 = arith.constant -1 : i32
    %50 = vector.broadcast %c-1_i32 : i32 to vector<32x128xi32>
    %51 = arith.addi %26, %50 : vector<32x128xi32>
    %c0_i32_22 = arith.constant 0 : i32
    %52 = vector.broadcast %c0_i32_22 : i32 to vector<32x128xi32>
    %53 = arith.cmpi sge, %51, %52 : vector<32x128xi32>
    %c-1_i32_23 = arith.constant -1 : i32
    %54 = vector.broadcast %c-1_i32_23 : i32 to vector<32x128xi32>
    %55 = arith.addi %26, %54 : vector<32x128xi32>
    %c16_i32_24 = arith.constant 16 : i32
    %56 = vector.broadcast %c16_i32_24 : i32 to vector<32x128xi32>
    %57 = arith.cmpi slt, %55, %56 : vector<32x128xi32>
    %58 = arith.andi %53, %57 : vector<32x128xi1>
    %cst_25 = arith.constant 0.000000e+00 : f32
    %59 = vector.broadcast %cst_25 : f32 to vector<32x128xf32>
    %60 = arith.select %58, %49, %59 : vector<32x128xi1>, vector<32x128xf32>
    %cst_26 = arith.constant dense<0.000000e+00> : vector<32x128xf32>
    %61 = tpu.matmul %60, %46, %cst_26 {dimension_numbers = #tpu.dot_dimension_numbers<[1], [0], [0], [1], [0, 0, 1, 1], [], []>} : vector<32x128xf32>, vector<128x128xf32>, vector<32x128xf32> -> vector<32x128xf32>
    %62 = arith.addf %45, %61 : vector<32x128xf32>
    %c256_27 = arith.constant 256 : index
    %c0_28 = arith.constant 0 : index
    %63 = vector.load %arg2[%c256_27, %c0_28] : memref<1408x128xf32, #tpu.memory_space<vmem>>, vector<128x128xf32>
    %cst_29 = arith.constant dense<0.000000e+00> : vector<32x128xf32>
    %64 = tpu.matmul %8, %63, %cst_29 {dimension_numbers = #tpu.dot_dimension_numbers<[1], [0], [0], [1], [0, 0, 1, 1], [], []>} : vector<32x128xf32>, vector<128x128xf32>, vector<32x128xf32> -> vector<32x128xf32>
    %65 = arith.addf %62, %64 : vector<32x128xf32>
    %c384 = arith.constant 384 : index
    %c0_30 = arith.constant 0 : index
    %66 = vector.load %arg2[%c384, %c0_30] : memref<1408x128xf32, #tpu.memory_space<vmem>>, vector<128x128xf32>
    %67 = vector.extract_strided_slice %8 {offsets = [1, 0], sizes = [31, 128], strides = [1, 1]} : vector<32x128xf32> to vector<31x128xf32>
    %cst_31 = arith.constant 0.000000e+00 : f32
    %68 = vector.broadcast %cst_31 : f32 to vector<1x128xf32>
    %69 = tpu.concatenate %67, %68 in 0 : vector<31x128xf32>, vector<1x128xf32> -> vector<32x128xf32>
    %c1_i32_32 = arith.constant 1 : i32
    %70 = vector.broadcast %c1_i32_32 : i32 to vector<32x128xi32>
    %71 = arith.addi %26, %70 : vector<32x128xi32>
    %c0_i32_33 = arith.constant 0 : i32
    %72 = vector.broadcast %c0_i32_33 : i32 to vector<32x128xi32>
    %73 = arith.cmpi sge, %71, %72 : vector<32x128xi32>
    %c1_i32_34 = arith.constant 1 : i32
    %74 = vector.broadcast %c1_i32_34 : i32 to vector<32x128xi32>
    %75 = arith.addi %26, %74 : vector<32x128xi32>
    %c16_i32_35 = arith.constant 16 : i32
    %76 = vector.broadcast %c16_i32_35 : i32 to vector<32x128xi32>
    %77 = arith.cmpi slt, %75, %76 : vector<32x128xi32>
    %78 = arith.andi %73, %77 : vector<32x128xi1>
    %cst_36 = arith.constant 0.000000e+00 : f32
    %79 = vector.broadcast %cst_36 : f32 to vector<32x128xf32>
    %80 = arith.select %78, %69, %79 : vector<32x128xi1>, vector<32x128xf32>
    %cst_37 = arith.constant dense<0.000000e+00> : vector<32x128xf32>
    %81 = tpu.matmul %80, %66, %cst_37 {dimension_numbers = #tpu.dot_dimension_numbers<[1], [0], [0], [1], [0, 0, 1, 1], [], []>} : vector<32x128xf32>, vector<128x128xf32>, vector<32x128xf32> -> vector<32x128xf32>
    %82 = arith.addf %65, %81 : vector<32x128xf32>
    %c512 = arith.constant 512 : index
    %c0_38 = arith.constant 0 : index
    %83 = vector.load %arg2[%c512, %c0_38] : memref<1408x128xf32, #tpu.memory_space<vmem>>, vector<128x128xf32>
    %84 = vector.extract_strided_slice %8 {offsets = [2, 0], sizes = [30, 128], strides = [1, 1]} : vector<32x128xf32> to vector<30x128xf32>
    %cst_39 = arith.constant 0.000000e+00 : f32
    %85 = vector.broadcast %cst_39 : f32 to vector<2x128xf32>
    %86 = tpu.concatenate %84, %85 in 0 : vector<30x128xf32>, vector<2x128xf32> -> vector<32x128xf32>
    %c2_i32 = arith.constant 2 : i32
    %87 = vector.broadcast %c2_i32 : i32 to vector<32x128xi32>
    %88 = arith.addi %26, %87 : vector<32x128xi32>
    %c0_i32_40 = arith.constant 0 : i32
    %89 = vector.broadcast %c0_i32_40 : i32 to vector<32x128xi32>
    %90 = arith.cmpi sge, %88, %89 : vector<32x128xi32>
    %c2_i32_41 = arith.constant 2 : i32
    %91 = vector.broadcast %c2_i32_41 : i32 to vector<32x128xi32>
    %92 = arith.addi %26, %91 : vector<32x128xi32>
    %c16_i32_42 = arith.constant 16 : i32
    %93 = vector.broadcast %c16_i32_42 : i32 to vector<32x128xi32>
    %94 = arith.cmpi slt, %92, %93 : vector<32x128xi32>
    %95 = arith.andi %90, %94 : vector<32x128xi1>
    %cst_43 = arith.constant 0.000000e+00 : f32
    %96 = vector.broadcast %cst_43 : f32 to vector<32x128xf32>
    %97 = arith.select %95, %86, %96 : vector<32x128xi1>, vector<32x128xf32>
    %cst_44 = arith.constant dense<0.000000e+00> : vector<32x128xf32>
    %98 = tpu.matmul %97, %83, %cst_44 {dimension_numbers = #tpu.dot_dimension_numbers<[1], [0], [0], [1], [0, 0, 1, 1], [], []>} : vector<32x128xf32>, vector<128x128xf32>, vector<32x128xf32> -> vector<32x128xf32>
    %99 = arith.addf %82, %98 : vector<32x128xf32>
    %100 = vector.broadcast %27 : vector<1x128xf32> to vector<32x128xf32>
    %101 = arith.addf %99, %100 : vector<32x128xf32>
    %cst_45 = arith.constant 0.000000e+00 : f32
    %102 = vector.broadcast %cst_45 : f32 to vector<32x128xf32>
    %103 = arith.maximumf %101, %102 : vector<32x128xf32>
    %c640 = arith.constant 640 : index
    %c0_46 = arith.constant 0 : index
    %104 = vector.load %arg2[%c640, %c0_46] : memref<1408x128xf32, #tpu.memory_space<vmem>>, vector<128x128xf32>
    %cst_47 = arith.constant 0.000000e+00 : f32
    %105 = vector.broadcast %cst_47 : f32 to vector<1x128xf32>
    %106 = vector.extract_strided_slice %9 {offsets = [0, 0], sizes = [31, 128], strides = [1, 1]} : vector<32x128xf32> to vector<31x128xf32>
    %107 = tpu.concatenate %105, %106 in 0 : vector<1x128xf32>, vector<31x128xf32> -> vector<32x128xf32>
    %c-1_i32_48 = arith.constant -1 : i32
    %108 = vector.broadcast %c-1_i32_48 : i32 to vector<32x128xi32>
    %109 = arith.addi %26, %108 : vector<32x128xi32>
    %c0_i32_49 = arith.constant 0 : i32
    %110 = vector.broadcast %c0_i32_49 : i32 to vector<32x128xi32>
    %111 = arith.cmpi sge, %109, %110 : vector<32x128xi32>
    %c-1_i32_50 = arith.constant -1 : i32
    %112 = vector.broadcast %c-1_i32_50 : i32 to vector<32x128xi32>
    %113 = arith.addi %26, %112 : vector<32x128xi32>
    %c16_i32_51 = arith.constant 16 : i32
    %114 = vector.broadcast %c16_i32_51 : i32 to vector<32x128xi32>
    %115 = arith.cmpi slt, %113, %114 : vector<32x128xi32>
    %116 = arith.andi %111, %115 : vector<32x128xi1>
    %cst_52 = arith.constant 0.000000e+00 : f32
    %117 = vector.broadcast %cst_52 : f32 to vector<32x128xf32>
    %118 = arith.select %116, %107, %117 : vector<32x128xi1>, vector<32x128xf32>
    %cst_53 = arith.constant dense<0.000000e+00> : vector<32x128xf32>
    %119 = tpu.matmul %118, %104, %cst_53 {dimension_numbers = #tpu.dot_dimension_numbers<[1], [0], [0], [1], [0, 0, 1, 1], [], []>} : vector<32x128xf32>, vector<128x128xf32>, vector<32x128xf32> -> vector<32x128xf32>
    %c768 = arith.constant 768 : index
    %c0_54 = arith.constant 0 : index
    %120 = vector.load %arg2[%c768, %c0_54] : memref<1408x128xf32, #tpu.memory_space<vmem>>, vector<128x128xf32>
    %cst_55 = arith.constant dense<0.000000e+00> : vector<32x128xf32>
    %121 = tpu.matmul %9, %120, %cst_55 {dimension_numbers = #tpu.dot_dimension_numbers<[1], [0], [0], [1], [0, 0, 1, 1], [], []>} : vector<32x128xf32>, vector<128x128xf32>, vector<32x128xf32> -> vector<32x128xf32>
    %122 = arith.addf %119, %121 : vector<32x128xf32>
    %c896 = arith.constant 896 : index
    %c0_56 = arith.constant 0 : index
    %123 = vector.load %arg2[%c896, %c0_56] : memref<1408x128xf32, #tpu.memory_space<vmem>>, vector<128x128xf32>
    %124 = vector.extract_strided_slice %9 {offsets = [1, 0], sizes = [31, 128], strides = [1, 1]} : vector<32x128xf32> to vector<31x128xf32>
    %cst_57 = arith.constant 0.000000e+00 : f32
    %125 = vector.broadcast %cst_57 : f32 to vector<1x128xf32>
    %126 = tpu.concatenate %124, %125 in 0 : vector<31x128xf32>, vector<1x128xf32> -> vector<32x128xf32>
    %c1_i32_58 = arith.constant 1 : i32
    %127 = vector.broadcast %c1_i32_58 : i32 to vector<32x128xi32>
    %128 = arith.addi %26, %127 : vector<32x128xi32>
    %c0_i32_59 = arith.constant 0 : i32
    %129 = vector.broadcast %c0_i32_59 : i32 to vector<32x128xi32>
    %130 = arith.cmpi sge, %128, %129 : vector<32x128xi32>
    %c1_i32_60 = arith.constant 1 : i32
    %131 = vector.broadcast %c1_i32_60 : i32 to vector<32x128xi32>
    %132 = arith.addi %26, %131 : vector<32x128xi32>
    %c16_i32_61 = arith.constant 16 : i32
    %133 = vector.broadcast %c16_i32_61 : i32 to vector<32x128xi32>
    %134 = arith.cmpi slt, %132, %133 : vector<32x128xi32>
    %135 = arith.andi %130, %134 : vector<32x128xi1>
    %cst_62 = arith.constant 0.000000e+00 : f32
    %136 = vector.broadcast %cst_62 : f32 to vector<32x128xf32>
    %137 = arith.select %135, %126, %136 : vector<32x128xi1>, vector<32x128xf32>
    %cst_63 = arith.constant dense<0.000000e+00> : vector<32x128xf32>
    %138 = tpu.matmul %137, %123, %cst_63 {dimension_numbers = #tpu.dot_dimension_numbers<[1], [0], [0], [1], [0, 0, 1, 1], [], []>} : vector<32x128xf32>, vector<128x128xf32>, vector<32x128xf32> -> vector<32x128xf32>
    %139 = arith.addf %122, %138 : vector<32x128xf32>
    %140 = vector.broadcast %28 : vector<1x128xf32> to vector<32x128xf32>
    %141 = arith.addf %139, %140 : vector<32x128xf32>
    %cst_64 = arith.constant 0.000000e+00 : f32
    %142 = vector.broadcast %cst_64 : f32 to vector<32x128xf32>
    %143 = arith.maximumf %141, %142 : vector<32x128xf32>
    %c1024 = arith.constant 1024 : index
    %c0_65 = arith.constant 0 : index
    %144 = vector.load %arg2[%c1024, %c0_65] : memref<1408x128xf32, #tpu.memory_space<vmem>>, vector<128x128xf32>
    %cst_66 = arith.constant 0.000000e+00 : f32
    %145 = vector.broadcast %cst_66 : f32 to vector<1x128xf32>
    %146 = vector.extract_strided_slice %143 {offsets = [0, 0], sizes = [31, 128], strides = [1, 1]} : vector<32x128xf32> to vector<31x128xf32>
    %147 = tpu.concatenate %145, %146 in 0 : vector<1x128xf32>, vector<31x128xf32> -> vector<32x128xf32>
    %c-1_i32_67 = arith.constant -1 : i32
    %148 = vector.broadcast %c-1_i32_67 : i32 to vector<32x128xi32>
    %149 = arith.addi %26, %148 : vector<32x128xi32>
    %c0_i32_68 = arith.constant 0 : i32
    %150 = vector.broadcast %c0_i32_68 : i32 to vector<32x128xi32>
    %151 = arith.cmpi sge, %149, %150 : vector<32x128xi32>
    %c-1_i32_69 = arith.constant -1 : i32
    %152 = vector.broadcast %c-1_i32_69 : i32 to vector<32x128xi32>
    %153 = arith.addi %26, %152 : vector<32x128xi32>
    %c16_i32_70 = arith.constant 16 : i32
    %154 = vector.broadcast %c16_i32_70 : i32 to vector<32x128xi32>
    %155 = arith.cmpi slt, %153, %154 : vector<32x128xi32>
    %156 = arith.andi %151, %155 : vector<32x128xi1>
    %cst_71 = arith.constant 0.000000e+00 : f32
    %157 = vector.broadcast %cst_71 : f32 to vector<32x128xf32>
    %158 = arith.select %156, %147, %157 : vector<32x128xi1>, vector<32x128xf32>
    %cst_72 = arith.constant dense<0.000000e+00> : vector<32x128xf32>
    %159 = tpu.matmul %158, %144, %cst_72 {dimension_numbers = #tpu.dot_dimension_numbers<[1], [0], [0], [1], [0, 0, 1, 1], [], []>} : vector<32x128xf32>, vector<128x128xf32>, vector<32x128xf32> -> vector<32x128xf32>
    %c1152 = arith.constant 1152 : index
    %c0_73 = arith.constant 0 : index
    %160 = vector.load %arg2[%c1152, %c0_73] : memref<1408x128xf32, #tpu.memory_space<vmem>>, vector<128x128xf32>
    %cst_74 = arith.constant dense<0.000000e+00> : vector<32x128xf32>
    %161 = tpu.matmul %143, %160, %cst_74 {dimension_numbers = #tpu.dot_dimension_numbers<[1], [0], [0], [1], [0, 0, 1, 1], [], []>} : vector<32x128xf32>, vector<128x128xf32>, vector<32x128xf32> -> vector<32x128xf32>
    %162 = arith.addf %159, %161 : vector<32x128xf32>
    %c1280 = arith.constant 1280 : index
    %c0_75 = arith.constant 0 : index
    %163 = vector.load %arg2[%c1280, %c0_75] : memref<1408x128xf32, #tpu.memory_space<vmem>>, vector<128x128xf32>
    %164 = vector.extract_strided_slice %143 {offsets = [1, 0], sizes = [31, 128], strides = [1, 1]} : vector<32x128xf32> to vector<31x128xf32>
    %cst_76 = arith.constant 0.000000e+00 : f32
    %165 = vector.broadcast %cst_76 : f32 to vector<1x128xf32>
    %166 = tpu.concatenate %164, %165 in 0 : vector<31x128xf32>, vector<1x128xf32> -> vector<32x128xf32>
    %c1_i32_77 = arith.constant 1 : i32
    %167 = vector.broadcast %c1_i32_77 : i32 to vector<32x128xi32>
    %168 = arith.addi %26, %167 : vector<32x128xi32>
    %c0_i32_78 = arith.constant 0 : i32
    %169 = vector.broadcast %c0_i32_78 : i32 to vector<32x128xi32>
    %170 = arith.cmpi sge, %168, %169 : vector<32x128xi32>
    %c1_i32_79 = arith.constant 1 : i32
    %171 = vector.broadcast %c1_i32_79 : i32 to vector<32x128xi32>
    %172 = arith.addi %26, %171 : vector<32x128xi32>
    %c16_i32_80 = arith.constant 16 : i32
    %173 = vector.broadcast %c16_i32_80 : i32 to vector<32x128xi32>
    %174 = arith.cmpi slt, %172, %173 : vector<32x128xi32>
    %175 = arith.andi %170, %174 : vector<32x128xi1>
    %cst_81 = arith.constant 0.000000e+00 : f32
    %176 = vector.broadcast %cst_81 : f32 to vector<32x128xf32>
    %177 = arith.select %175, %166, %176 : vector<32x128xi1>, vector<32x128xf32>
    %cst_82 = arith.constant dense<0.000000e+00> : vector<32x128xf32>
    %178 = tpu.matmul %177, %163, %cst_82 {dimension_numbers = #tpu.dot_dimension_numbers<[1], [0], [0], [1], [0, 0, 1, 1], [], []>} : vector<32x128xf32>, vector<128x128xf32>, vector<32x128xf32> -> vector<32x128xf32>
    %179 = arith.addf %162, %178 : vector<32x128xf32>
    %180 = vector.broadcast %29 : vector<1x128xf32> to vector<32x128xf32>
    %181 = arith.addf %179, %180 : vector<32x128xf32>
    %cst_83 = arith.constant 0.000000e+00 : f32
    %182 = vector.broadcast %cst_83 : f32 to vector<32x128xf32>
    %183 = arith.maximumf %181, %182 : vector<32x128xf32>
    %184 = vector.extract_strided_slice %7 {offsets = [0, 0], sizes = [32, 128], strides = [1, 1]} : vector<32x512xf32> to vector<32x128xf32>
    %185 = arith.addf %184, %103 : vector<32x128xf32>
    %186 = vector.extract_strided_slice %7 {offsets = [0, 384], sizes = [32, 128], strides = [1, 1]} : vector<32x512xf32> to vector<32x128xf32>
    %187 = arith.addf %183, %186 : vector<32x128xf32>
    %188 = tpu.concatenate %185, %187 in 1 : vector<32x128xf32>, vector<32x128xf32> -> vector<32x256xf32>
    %c0_84 = arith.constant 0 : index
    %c0_85 = arith.constant 0 : index
    %189 = vector.load %arg3[%c0_84, %c0_85] : memref<32x256xf32, #tpu.memory_space<vmem>>, vector<32x256xf32>
    tpu.vector_store %arg3[%c0_84, %c0_85], %188 {strides = array<i32>} : memref<32x256xf32, #tpu.memory_space<vmem>>, vector<32x256xf32>,
    return
  }
}

</mosaic_0001>

<llo_original>
// kernel: inception_a_forward.1
$region0: #{inception_a_forward.1}
  #allocation0 [shape = 'u32[]', space=smem, size = 0x4, offset = 0x4, fixed_abs, tag = 'smem constant byte address 0x4 - core index']
  #allocation1 [shape = 'u32[72,128]{1,0:T(1,128)}', space=vmem, size = 0x9000, scoped, tag = 'internal scratch']
  %s0 = inlined_call_operand.vmem [shape: f32[32,8], index: 0, kind: input, shape index: {}]
  %s1 = inlined_call_operand.vmem [shape: f32[16,512], index: 1, kind: input, shape index: {}]
  %s2 = inlined_call_operand.hbm [shape: f32[1408,128], index: 2, kind: input, shape index: {}]
  %s3 = inlined_call_operand.vmem [shape: f32[32,256], index: 3, kind: output, shape index: {}]
  %s4 = sld [smem:[#allocation0]]
  $region26: #{inception_a_forward.1} parent=0
    _
  %s6 = ssub.s32 1, %s4
  %s7 = scalar_select 0, %s6, %s4
  $region1: #{inception_a_forward.1} parent=0
    #allocation2 [shape = 'u8[720896]{0}', space=vmem, size = 0xb0000, scoped, tag = 'input window, operand 2, single buffered']
    #allocation3 [shape = 's32[1]{0}', space=sflag, size = 0x4, scoped, tag = 'scoped memory for inception_a_forward.1']
    %8 = vsyncpa [#allocation3], 0
    // Predicated region
    $region2: #{inception_a_forward.1} parent=1 // pred_check
      _
    $region3: #{inception_a_forward.1} parent=1 // pred_check_branch
      %10 = sbr.rel (0) target = $region5
    $region4: #{inception_a_forward.1} parent=1 // pred_region
      _
    $region5: #{inception_a_forward.1} parent=1 // pred_fallthru
      _
    // Predicated region
    $region6: #{inception_a_forward.1} parent=1 // pred_check
      _
    $region7: #{inception_a_forward.1} parent=1 // pred_check_branch
      %12 = sbr.rel (0) target = $region9
    $region8: #{inception_a_forward.1} parent=1 // pred_region
      _
    $region9: #{inception_a_forward.1} parent=1 // pred_fallthru
      _
    // Predicated region
    $region10: #{inception_a_forward.1} parent=1 // pred_check
      _
    $region11: #{inception_a_forward.1} parent=1 // pred_check_branch
      %14 = sbr.rel (0) target = $region13
    $region12: #{inception_a_forward.1} parent=1 // pred_region
      %16 = vsyncadd [#allocation3], 0
      %s17 = sshll.u32 %s2, 4
      %s18 = int_to_ptr.hbm [resolvable:$true] %s17
      %s19 = sshll.u32 [#allocation2], 4
      %s20 = int_to_ptr.vmem [resolvable:$true] %s19
      %25 = dma.hbm_to_vmem [thread:$0]  %s18, 22528, %s20, [#allocation3], 128, 128, 8
    $region13: #{inception_a_forward.1} parent=1 // pred_fallthru
      _
    // Predicated region
    $region14: #{inception_a_forward.1} parent=1 // pred_check
      _
    $region15: #{inception_a_forward.1} parent=1 // pred_check_branch
      %27 = sbr.rel (0) target = $region17
    $region16: #{inception_a_forward.1} parent=1 // pred_region
      %29 = dma.done [#allocation3], 22528
    $region17: #{inception_a_forward.1} parent=1 // pred_fallthru
      _
    %v30 = vld [vmem:[%s1] sm:$0xff]
    %v31 = vld [vmem:[%s1 + $0x8] sm:$0xff]
    %v32 = vld [vmem:[%s1 + $0x10] sm:$0xff]
    %v33 = vld [vmem:[%s1 + $0x18] sm:$0xff]
    %s34 = scalar_lea.vmem %s1, 32
    %v35 = vld [vmem:[%s34] ss:$8 sm:$0xf]
    %v36 = vld [vmem:[%s0] sm:$0xff]
    %v37 = vld [vmem:[%s0 + $0x8] sm:$0xff]
    %v38 = vld [vmem:[%s0 + $0x10] sm:$0xff]
    %v39 = vld [vmem:[%s0 + $0x18] sm:$0xff]
    %v41 = vperm.slane %v35, 0
    %v42 = vperm.slane %v35, 1
    %v43 = vperm.slane %v35, 2
    %v44 = vperm.slane %v35, 3
    %vm49 = vcmask 64512
    %v51 = vsel %vm49, %v36, 0
    %v54 = vsel %vm49, %v37, 0
    %v57 = vsel %vm49, %v38, 0
    %v60 = vsel %vm49, %v39, 0
    %62 = vmatpush.msra.mxu0 0.0
    %63 = vmatpush.msra.mxu0 0.0
    %64 = vmatpush.msra.mxu0 0.0
    %65 = vmatpush.msra.mxu0 0.0
    %66 = vmatpush.msra.mxu0 0.0
    %67 = vmatpush.msra.mxu0 0.0
    %68 = vmatpush.msra.mxu0 0.0
    %69 = vmatpush.msra.mxu0 0.0
    %70 = vmatpush.msra.mxu0 0.0
    %71 = vmatpush.msra.mxu0 0.0
    %72 = vmatpush.msra.mxu0 0.0
    %73 = vmatpush.msra.mxu0 0.0
    %74 = vmatpush.msra.mxu0 0.0
    %75 = vmatpush.msra.mxu0 0.0
    %76 = vmatpush.msra.mxu0 0.0
    %77 = vmatpush.msra.mxu0 %v30
    %78 = vmatmul.f32.gmra.mxu0 %v51
    %v79 = vpop.f32.mrf.mxu0
    %v80 = vadd.f32 %v41, %v79
    %81 = vmatmul.f32.gmra.mxu0 %v54
    %v82 = vpop.f32.mrf.mxu0
    %v83 = vadd.f32 %v41, %v82
    %84 = vmatmul.f32.gmra.mxu0 %v57
    %v85 = vpop.f32.mrf.mxu0
    %v86 = vadd.f32 %v41, %v85
    %87 = vmatmul.f32.gmra.mxu0 %v60
    %v88 = vpop.f32.mrf.mxu0
    %v89 = vadd.f32 %v41, %v88
    %90 = vdwg.mxu0
    %91 = vmatpush.msra.mxu0 0.0
    %92 = vmatpush.msra.mxu0 0.0
    %93 = vmatpush.msra.mxu0 0.0
    %94 = vmatpush.msra.mxu0 0.0
    %95 = vmatpush.msra.mxu0 0.0
    %96 = vmatpush.msra.mxu0 0.0
    %97 = vmatpush.msra.mxu0 0.0
    %98 = vmatpush.msra.mxu0 0.0
    %99 = vmatpush.msra.mxu0 0.0
    %100 = vmatpush.msra.mxu0 0.0
    %101 = vmatpush.msra.mxu0 0.0
    %102 = vmatpush.msra.mxu0 0.0
    %103 = vmatpush.msra.mxu0 0.0
    %104 = vmatpush.msra.mxu0 0.0
    %105 = vmatpush.msra.mxu0 0.0
    %106 = vmatpush.msra.mxu0 %v31
    %107 = vmatmul.f32.gmra.mxu0 %v51
    %v108 = vpop.f32.mrf.mxu0
    %v109 = vadd.f32 %v42, %v108
    %110 = vmatmul.f32.gmra.mxu0 %v54
    %v111 = vpop.f32.mrf.mxu0
    %v112 = vadd.f32 %v42, %v111
    %113 = vmatmul.f32.gmra.mxu0 %v57
    %v114 = vpop.f32.mrf.mxu0
    %v115 = vadd.f32 %v42, %v114
    %116 = vmatmul.f32.gmra.mxu0 %v60
    %v117 = vpop.f32.mrf.mxu0
    %v118 = vadd.f32 %v42, %v117
    %119 = vdwg.mxu0
    %120 = vmatpush.msra.mxu0 0.0
    %121 = vmatpush.msra.mxu0 0.0
    %122 = vmatpush.msra.mxu0 0.0
    %123 = vmatpush.msra.mxu0 0.0
    %124 = vmatpush.msra.mxu0 0.0
    %125 = vmatpush.msra.mxu0 0.0
    %126 = vmatpush.msra.mxu0 0.0
    %127 = vmatpush.msra.mxu0 0.0
    %128 = vmatpush.msra.mxu0 0.0
    %129 = vmatpush.msra.mxu0 0.0
    %130 = vmatpush.msra.mxu0 0.0
    %131 = vmatpush.msra.mxu0 0.0
    %132 = vmatpush.msra.mxu0 0.0
    %133 = vmatpush.msra.mxu0 0.0
    %134 = vmatpush.msra.mxu0 0.0
    %135 = vmatpush.msra.mxu0 %v32
    %136 = vmatmul.f32.gmra.mxu0 %v51
    %v137 = vpop.f32.mrf.mxu0
    %v138 = vadd.f32 %v43, %v137
    %139 = vmatmul.f32.gmra.mxu0 %v54
    %v140 = vpop.f32.mrf.mxu0
    %v141 = vadd.f32 %v43, %v140
    %142 = vmatmul.f32.gmra.mxu0 %v57
    %v143 = vpop.f32.mrf.mxu0
    %v144 = vadd.f32 %v43, %v143
    %145 = vmatmul.f32.gmra.mxu0 %v60
    %v146 = vpop.f32.mrf.mxu0
    %v147 = vadd.f32 %v43, %v146
    %148 = vdwg.mxu0
    %149 = vmatpush.msra.mxu0 0.0
    %150 = vmatpush.msra.mxu0 0.0
    %151 = vmatpush.msra.mxu0 0.0
    %152 = vmatpush.msra.mxu0 0.0
    %153 = vmatpush.msra.mxu0 0.0
    %154 = vmatpush.msra.mxu0 0.0
    %155 = vmatpush.msra.mxu0 0.0
    %156 = vmatpush.msra.mxu0 0.0
    %157 = vmatpush.msra.mxu0 0.0
    %158 = vmatpush.msra.mxu0 0.0
    %159 = vmatpush.msra.mxu0 0.0
    %160 = vmatpush.msra.mxu0 0.0
    %161 = vmatpush.msra.mxu0 0.0
    %162 = vmatpush.msra.mxu0 0.0
    %163 = vmatpush.msra.mxu0 0.0
    %164 = vmatpush.msra.mxu0 %v33
    %165 = vmatmul.f32.gmra.mxu0 %v51
    %v166 = vpop.f32.mrf.mxu0
    %v167 = vadd.f32 %v44, %v166
    %168 = vmatmul.f32.gmra.mxu0 %v54
    %v169 = vpop.f32.mrf.mxu0
    %v170 = vadd.f32 %v44, %v169
    %171 = vmatmul.f32.gmra.mxu0 %v57
    %v172 = vpop.f32.mrf.mxu0
    %v173 = vadd.f32 %v44, %v172
    %174 = vmatmul.f32.gmra.mxu0 %v60
    %v175 = vpop.f32.mrf.mxu0
    %v176 = vadd.f32 %v44, %v175
    %177 = vdwg.mxu0
    %v178 = vmax.f32 %v80, 0.0
    %v179 = vmax.f32 %v109, 0.0
    %v180 = vmax.f32 %v138, 0.0
    %v181 = vmax.f32 %v167, 0.0
    %v182 = vmax.f32 %v83, 0.0
    %v183 = vmax.f32 %v112, 0.0
    %v184 = vmax.f32 %v141, 0.0
    %v185 = vmax.f32 %v170, 0.0
    %v186 = vmax.f32 %v86, 0.0
    %v187 = vmax.f32 %v115, 0.0
    %v188 = vmax.f32 %v144, 0.0
    %v189 = vmax.f32 %v173, 0.0
    %v190 = vmax.f32 %v89, 0.0
    %v191 = vmax.f32 %v118, 0.0
    %v192 = vmax.f32 %v147, 0.0
    %v193 = vmax.f32 %v176, 0.0
    %v194 = vlaneseq
    %v195 = vshrl.u32 %v194, 7
    %v196 = vadd.s32 %v195, 8
    %v197 = vadd.s32 %v195, 16
    %v198 = vadd.s32 %v195, 24
    %vm199 = vcmp.lt.s32.totalorder %v195, 0
    %v200 = vsub.s32 0, %v195
    %v201 = vsel %vm199, %v200, %v195
    %v202 = vshrl.u32 %v201, 4
    %v203 = vand.u32 %v201, 15
    %v204 = vsub.s32 0, %v203
    %v205 = vsel %vm199, %v204, %v203
    %vm206 = vcmp.lt.s32.totalorder %v196, 0
    %v207 = vsub.s32 0, %v196
    %v208 = vsel %vm206, %v207, %v196
    %v209 = vshrl.u32 %v208, 4
    %v210 = vand.u32 %v208, 15
    %v211 = vsub.s32 0, %v210
    %v212 = vsel %vm206, %v211, %v210
    %vm213 = vcmp.lt.s32.totalorder %v197, 0
    %v214 = vsub.s32 0, %v197
    %v215 = vsel %vm213, %v214, %v197
    %v216 = vshrl.u32 %v215, 4
    %v217 = vand.u32 %v215, 15
    %v218 = vsub.s32 0, %v217
    %v219 = vsel %vm213, %v218, %v217
    %vm220 = vcmp.lt.s32.totalorder %v198, 0
    %v221 = vsub.s32 0, %v198
    %v222 = vsel %vm220, %v221, %v198
    %v223 = vshrl.u32 %v222, 4
    %v224 = vand.u32 %v222, 15
    %v225 = vsub.s32 0, %v224
    %v226 = vsel %vm220, %v225, %v224
    %vm227 = vcmp.ne.s32.totalorder %v205, 0
    %vm228 = vcmp.ne.s32.totalorder %v212, 0
    %vm229 = vcmp.ne.s32.totalorder %v219, 0
    %vm230 = vcmp.ne.s32.totalorder %v226, 0
    %vm231 = vcmp.lt.s32.totalorder %v205, 0
    %vm232 = vcmp.lt.s32.totalorder %v212, 0
    %vm233 = vcmp.lt.s32.totalorder %v219, 0
    %vm234 = vcmp.lt.s32.totalorder %v226, 0
    %vm235 = vmand %vm231, %vm227
    %vm236 = vmand %vm232, %vm228
    %vm237 = vmand %vm233, %vm229
    %vm238 = vmand %vm234, %vm230
    %v239 = vadd.s32 %v205, 16
    %v240 = vadd.s32 %v212, 16
    %v241 = vadd.s32 %v219, 16
    %v242 = vadd.s32 %v226, 16
    %v243 = vsel %vm235, %v239, %v205
    %v244 = vsel %vm236, %v240, %v212
    %v245 = vsel %vm237, %v241, %v219
    %v246 = vsel %vm238, %v242, %v226
    %v247 = vld [vmem:[%s1 + $0x21] ss:$0 sm:$0xff]
    %v248 = vld [vmem:[%s1 + $0x29] ss:$0 sm:$0xff]
    %v249 = vld [vmem:[%s1 + $0x31] ss:$0 sm:$0xff]
    %v250 = vld [vmem:[#allocation2] sm:$0xff]
    %v251 = vld [vmem:[#allocation2 + $0x8] sm:$0xff]
    %v252 = vld [vmem:[#allocation2 + $0x10] sm:$0xff]
    %v253 = vld [vmem:[#allocation2 + $0x18] sm:$0xff]
    %v254 = vld [vmem:[#allocation2 + $0x20] sm:$0xff]
    %v255 = vld [vmem:[#allocation2 + $0x28] sm:$0xff]
    %v256 = vld [vmem:[#allocation2 + $0x30] sm:$0xff]
    %v257 = vld [vmem:[#allocation2 + $0x38] sm:$0xff]
    %v258 = vld [vmem:[#allocation2 + $0x40] sm:$0xff]
    %v259 = vld [vmem:[#allocation2 + $0x48] sm:$0xff]
    %v260 = vld [vmem:[#allocation2 + $0x50] sm:$0xff]
    %v261 = vld [vmem:[#allocation2 + $0x58] sm:$0xff]
    %v262 = vld [vmem:[#allocation2 + $0x60] sm:$0xff]
    %v263 = vld [vmem:[#allocation2 + $0x68] sm:$0xff]
    %v264 = vld [vmem:[#allocation2 + $0x70] sm:$0xff]
    %v265 = vld [vmem:[#allocation2 + $0x78] sm:$0xff]
    %vm270 = vcmask 1041408
    %v271 = vrot.slane %v179, 6
    %v272 = vrot.slane %v183, 6
    %v273 = vsel %vm270, %v271, %v272
    %v274 = vrot.slane %v187, 6
    %v275 = vsel %vm270, %v272, %v274
    %v276 = vrot.slane %v191, 6
    %v277 = vsel %vm270, %v274, %v276
    %v282 = vsel %vm270, 0.0, %v271
    %v283 = vadd.s32 %v243, 4294967294
    %v284 = vadd.s32 %v244, 4294967294
    %v285 = vadd.s32 %v245, 4294967294
    %v286 = vadd.s32 %v246, 4294967294
    %vm287 = vcmp.ge.s32.totalorder %v283, 0
    %vm288 = vcmp.ge.s32.totalorder %v284, 0
    %vm289 = vcmp.ge.s32.totalorder %v285, 0
    %vm290 = vcmp.ge.s32.totalorder %v286, 0
    %vm291 = vcmp.lt.s32.totalorder %v283, 16
    %vm292 = vcmp.lt.s32.totalorder %v284, 16
    %vm293 = vcmp.lt.s32.totalorder %v285, 16
    %vm294 = vcmp.lt.s32.totalorder %v286, 16
    %vm295 = vmand %vm287, %vm291
    %vm296 = vmand %vm288, %vm292
    %vm297 = vmand %vm289, %vm293
    %vm298 = vmand %vm290, %vm294
    %v299 = vsel %vm295, %v282, 0.0
    %v300 = vsel %vm296, %v273, 0.0
    %v301 = vsel %vm297, %v275, 0.0
    %v302 = vsel %vm298, %v277, 0.0
    %v303 = vld [vmem:[#allocation2 + $0x80] sm:$0xff]
    %v304 = vld [vmem:[#allocation2 + $0x88] sm:$0xff]
    %v305 = vld [vmem:[#allocation2 + $0x90] sm:$0xff]
    %v306 = vld [vmem:[#allocation2 + $0x98] sm:$0xff]
    %v307 = vld [vmem:[#allocation2 + $0xa0] sm:$0xff]
    %v308 = vld [vmem:[#allocation2 + $0xa8] sm:$0xff]
    %v309 = vld [vmem:[#allocation2 + $0xb0] sm:$0xff]
    %v310 = vld [vmem:[#allocation2 + $0xb8] sm:$0xff]
    %v311 = vld [vmem:[#allocation2 + $0xc0] sm:$0xff]
    %v312 = vld [vmem:[#allocation2 + $0xc8] sm:$0xff]
    %v313 = vld [vmem:[#allocation2 + $0xd0] sm:$0xff]
    %v314 = vld [vmem:[#allocation2 + $0xd8] sm:$0xff]
    %v315 = vld [vmem:[#allocation2 + $0xe0] sm:$0xff]
    %v316 = vld [vmem:[#allocation2 + $0xe8] sm:$0xff]
    %v317 = vld [vmem:[#allocation2 + $0xf0] sm:$0xff]
    %v318 = vld [vmem:[#allocation2 + $0xf8] sm:$0xff]
    %vm319 = vcmask 1040384
    %v320 = vrot.slane %v179, 7
    %v321 = vrot.slane %v183, 7
    %v322 = vsel %vm319, %v320, %v321
    %v323 = vrot.slane %v187, 7
    %v324 = vsel %vm319, %v321, %v323
    %v325 = vrot.slane %v191, 7
    %v326 = vsel %vm319, %v323, %v325
    %v331 = vsel %vm319, 0.0, %v320
    %v332 = vadd.s32 %v243, 4294967295
    %v333 = vadd.s32 %v244, 4294967295
    %v334 = vadd.s32 %v245, 4294967295
    %v335 = vadd.s32 %v246, 4294967295
    %vm336 = vcmp.ge.s32.totalorder %v332, 0
    %vm337 = vcmp.ge.s32.totalorder %v333, 0
    %vm338 = vcmp.ge.s32.totalorder %v334, 0
    %vm339 = vcmp.ge.s32.totalorder %v335, 0
    %vm340 = vcmp.lt.s32.totalorder %v332, 16
    %vm341 = vcmp.lt.s32.totalorder %v333, 16
    %vm342 = vcmp.lt.s32.totalorder %v334, 16
    %vm343 = vcmp.lt.s32.totalorder %v335, 16
    %vm344 = vmand %vm336, %vm340
    %vm345 = vmand %vm337, %vm341
    %vm346 = vmand %vm338, %vm342
    %vm347 = vmand %vm339, %vm343
    %v348 = vsel %vm344, %v331, 0.0
    %v349 = vsel %vm345, %v322, 0.0
    %v350 = vsel %vm346, %v324, 0.0
    %v351 = vsel %vm347, %v326, 0.0
    %352 = vmatpush.msra.mxu0 %v318
    %353 = vmatpush.msra.mxu0 %v317
    %354 = vmatpush.msra.mxu0 %v316
    %355 = vmatpush.msra.mxu0 %v315
    %356 = vmatpush.msra.mxu0 %v314
    %357 = vmatpush.msra.mxu0 %v313
    %358 = vmatpush.msra.mxu0 %v312
    %359 = vmatpush.msra.mxu0 %v311
    %360 = vmatpush.msra.mxu0 %v310
    %361 = vmatpush.msra.mxu0 %v309
    %362 = vmatpush.msra.mxu0 %v308
    %363 = vmatpush.msra.mxu0 %v307
    %364 = vmatpush.msra.mxu0 %v306
    %365 = vmatpush.msra.mxu0 %v305
    %366 = vmatpush.msra.mxu0 %v304
    %367 = vmatpush.msra.mxu0 %v303
    %368 = vmatmul.f32.gmra.mxu0 %v348
    %v369 = vpop.f32.mrf.mxu0
    %v370 = vadd.f32 0.0, %v369
    %371 = vmatmul.f32.gmra.mxu0 %v349
    %v372 = vpop.f32.mrf.mxu0
    %v373 = vadd.f32 0.0, %v372
    %374 = vmatmul.f32.gmra.mxu0 %v350
    %v375 = vpop.f32.mrf.mxu0
    %v376 = vadd.f32 0.0, %v375
    %377 = vmatmul.f32.gmra.mxu0 %v351
    %v378 = vpop.f32.mrf.mxu0
    %v379 = vadd.f32 0.0, %v378
    %380 = vdwg.mxu0
    %381 = vmatpush.msra.mxu0 %v265
    %382 = vmatpush.msra.mxu0 %v264
    %383 = vmatpush.msra.mxu0 %v263
    %384 = vmatpush.msra.mxu0 %v262
    %385 = vmatpush.msra.mxu0 %v261
    %386 = vmatpush.msra.mxu0 %v260
    %387 = vmatpush.msra.mxu0 %v259
    %388 = vmatpush.msra.mxu0 %v258
    %389 = vmatpush.msra.mxu0 %v257
    %390 = vmatpush.msra.mxu0 %v256
    %391 = vmatpush.msra.mxu0 %v255
    %392 = vmatpush.msra.mxu0 %v254
    %393 = vmatpush.msra.mxu0 %v253
    %394 = vmatpush.msra.mxu0 %v252
    %395 = vmatpush.msra.mxu0 %v251
    %396 = vmatpush.msra.mxu0 %v250
    %397 = vmatmul.f32.gmra.mxu0 %v299
    %v398 = vpop.f32.mrf.mxu0
    %v399 = vadd.f32 %v370, %v398
    %400 = vmatmul.f32.gmra.mxu0 %v300
    %v401 = vpop.f32.mrf.mxu0
    %v402 = vadd.f32 %v373, %v401
    %403 = vmatmul.f32.gmra.mxu0 %v301
    %v404 = vpop.f32.mrf.mxu0
    %v405 = vadd.f32 %v376, %v404
    %406 = vmatmul.f32.gmra.mxu0 %v302
    %v407 = vpop.f32.mrf.mxu0
    %v408 = vadd.f32 %v379, %v407
    %409 = vdwg.mxu0
    %v410 = vld [vmem:[#allocation2 + $0x100] sm:$0xff]
    %v411 = vld [vmem:[#allocation2 + $0x108] sm:$0xff]
    %v412 = vld [vmem:[#allocation2 + $0x110] sm:$0xff]
    %v413 = vld [vmem:[#allocation2 + $0x118] sm:$0xff]
    %v414 = vld [vmem:[#allocation2 + $0x120] sm:$0xff]
    %v415 = vld [vmem:[#allocation2 + $0x128] sm:$0xff]
    %v416 = vld [vmem:[#allocation2 + $0x130] sm:$0xff]
    %v417 = vld [vmem:[#allocation2 + $0x138] sm:$0xff]
    %v418 = vld [vmem:[#allocation2 + $0x140] sm:$0xff]
    %v419 = vld [vmem:[#allocation2 + $0x148] sm:$0xff]
    %v420 = vld [vmem:[#allocation2 + $0x150] sm:$0xff]
    %v421 = vld [vmem:[#allocation2 + $0x158] sm:$0xff]
    %v422 = vld [vmem:[#allocation2 + $0x160] sm:$0xff]
    %v423 = vld [vmem:[#allocation2 + $0x168] sm:$0xff]
    %v424 = vld [vmem:[#allocation2 + $0x170] sm:$0xff]
    %v425 = vld [vmem:[#allocation2 + $0x178] sm:$0xff]
    %426 = vmatpush.msra.mxu0 %v425
    %427 = vmatpush.msra.mxu0 %v424
    %428 = vmatpush.msra.mxu0 %v423
    %429 = vmatpush.msra.mxu0 %v422
    %430 = vmatpush.msra.mxu0 %v421
    %431 = vmatpush.msra.mxu0 %v420
    %432 = vmatpush.msra.mxu0 %v419
    %433 = vmatpush.msra.mxu0 %v418
    %434 = vmatpush.msra.mxu0 %v417
    %435 = vmatpush.msra.mxu0 %v416
    %436 = vmatpush.msra.mxu0 %v415
    %437 = vmatpush.msra.mxu0 %v414
    %438 = vmatpush.msra.mxu0 %v413
    %439 = vmatpush.msra.mxu0 %v412
    %440 = vmatpush.msra.mxu0 %v411
    %441 = vmatpush.msra.mxu0 %v410
    %442 = vmatmul.f32.gmra.mxu0 %v179
    %v443 = vpop.f32.mrf.mxu0
    %v444 = vadd.f32 0.0, %v443
    %445 = vmatmul.f32.gmra.mxu0 %v183
    %v446 = vpop.f32.mrf.mxu0
    %v447 = vadd.f32 0.0, %v446
    %448 = vmatmul.f32.gmra.mxu0 %v187
    %v449 = vpop.f32.mrf.mxu0
    %v450 = vadd.f32 0.0, %v449
    %451 = vmatmul.f32.gmra.mxu0 %v191
    %v452 = vpop.f32.mrf.mxu0
    %v453 = vadd.f32 0.0, %v452
    %454 = vdwg.mxu0
    %v455 = vadd.f32 %v399, %v444
    %v456 = vadd.f32 %v402, %v447
    %v457 = vadd.f32 %v405, %v450
    %v458 = vadd.f32 %v408, %v453
    %v459 = vld [vmem:[#allocation2 + $0x180] sm:$0xff]
    %v460 = vld [vmem:[#allocation2 + $0x188] sm:$0xff]
    %v461 = vld [vmem:[#allocation2 + $0x190] sm:$0xff]
    %v462 = vld [vmem:[#allocation2 + $0x198] sm:$0xff]
    %v463 = vld [vmem:[#allocation2 + $0x1a0] sm:$0xff]
    %v464 = vld [vmem:[#allocation2 + $0x1a8] sm:$0xff]
    %v465 = vld [vmem:[#allocation2 + $0x1b0] sm:$0xff]
    %v466 = vld [vmem:[#allocation2 + $0x1b8] sm:$0xff]
    %v467 = vld [vmem:[#allocation2 + $0x1c0] sm:$0xff]
    %v468 = vld [vmem:[#allocation2 + $0x1c8] sm:$0xff]
    %v469 = vld [vmem:[#allocation2 + $0x1d0] sm:$0xff]
    %v470 = vld [vmem:[#allocation2 + $0x1d8] sm:$0xff]
    %v471 = vld [vmem:[#allocation2 + $0x1e0] sm:$0xff]
    %v472 = vld [vmem:[#allocation2 + $0x1e8] sm:$0xff]
    %v473 = vld [vmem:[#allocation2 + $0x1f0] sm:$0xff]
    %v474 = vld [vmem:[#allocation2 + $0x1f8] sm:$0xff]
    %vm475 = vcmask 1046528
    %v476 = vrot.slane %v179, 1
    %v477 = vrot.slane %v183, 1
    %v478 = vsel %vm475, %v476, %v477
    %v479 = vrot.slane %v187, 1
    %v480 = vsel %vm475, %v477, %v479
    %v481 = vrot.slane %v191, 1
    %v482 = vsel %vm475, %v479, %v481
    %v487 = vsel %vm475, %v481, 0.0
    %v488 = vadd.s32 %v243, 1
    %v489 = vadd.s32 %v244, 1
    %v490 = vadd.s32 %v245, 1
    %v491 = vadd.s32 %v246, 1
    %vm492 = vcmp.ge.s32.totalorder %v488, 0
    %vm493 = vcmp.ge.s32.totalorder %v489, 0
    %vm494 = vcmp.ge.s32.totalorder %v490, 0
    %vm495 = vcmp.ge.s32.totalorder %v491, 0
    %vm496 = vcmp.lt.s32.totalorder %v488, 16
    %vm497 = vcmp.lt.s32.totalorder %v489, 16
    %vm498 = vcmp.lt.s32.totalorder %v490, 16
    %vm499 = vcmp.lt.s32.totalorder %v491, 16
    %vm500 = vmand %vm492, %vm496
    %vm501 = vmand %vm493, %vm497
    %vm502 = vmand %vm494, %vm498
    %vm503 = vmand %vm495, %vm499
    %v504 = vsel %vm500, %v478, 0.0
    %v505 = vsel %vm501, %v480, 0.0
    %v506 = vsel %vm502, %v482, 0.0
    %v507 = vsel %vm503, %v487, 0.0
    %508 = vmatpush.msra.mxu0 %v474
    %509 = vmatpush.msra.mxu0 %v473
    %510 = vmatpush.msra.mxu0 %v472
    %511 = vmatpush.msra.mxu0 %v471
    %512 = vmatpush.msra.mxu0 %v470
    %513 = vmatpush.msra.mxu0 %v469
    %514 = vmatpush.msra.mxu0 %v468
    %515 = vmatpush.msra.mxu0 %v467
    %516 = vmatpush.msra.mxu0 %v466
    %517 = vmatpush.msra.mxu0 %v465
    %518 = vmatpush.msra.mxu0 %v464
    %519 = vmatpush.msra.mxu0 %v463
    %520 = vmatpush.msra.mxu0 %v462
    %521 = vmatpush.msra.mxu0 %v461
    %522 = vmatpush.msra.mxu0 %v460
    %523 = vmatpush.msra.mxu0 %v459
    %524 = vmatmul.f32.gmra.mxu0 %v504
    %v525 = vpop.f32.mrf.mxu0
    %v526 = vadd.f32 0.0, %v525
    %527 = vmatmul.f32.gmra.mxu0 %v505
    %v528 = vpop.f32.mrf.mxu0
    %v529 = vadd.f32 0.0, %v528
    %530 = vmatmul.f32.gmra.mxu0 %v506
    %v531 = vpop.f32.mrf.mxu0
    %v532 = vadd.f32 0.0, %v531
    %533 = vmatmul.f32.gmra.mxu0 %v507
    %v534 = vpop.f32.mrf.mxu0
    %v535 = vadd.f32 0.0, %v534
    %536 = vdwg.mxu0
    %v537 = vadd.f32 %v455, %v526
    %v538 = vadd.f32 %v456, %v529
    %v539 = vadd.f32 %v457, %v532
    %v540 = vadd.f32 %v458, %v535
    %v541 = vld [vmem:[#allocation2 + $0x200] sm:$0xff]
    %v542 = vld [vmem:[#allocation2 + $0x208] sm:$0xff]
    %v543 = vld [vmem:[#allocation2 + $0x210] sm:$0xff]
    %v544 = vld [vmem:[#allocation2 + $0x218] sm:$0xff]
    %v545 = vld [vmem:[#allocation2 + $0x220] sm:$0xff]
    %v546 = vld [vmem:[#allocation2 + $0x228] sm:$0xff]
    %v547 = vld [vmem:[#allocation2 + $0x230] sm:$0xff]
    %v548 = vld [vmem:[#allocation2 + $0x238] sm:$0xff]
    %v549 = vld [vmem:[#allocation2 + $0x240] sm:$0xff]
    %v550 = vld [vmem:[#allocation2 + $0x248] sm:$0xff]
    %v551 = vld [vmem:[#allocation2 + $0x250] sm:$0xff]
    %v552 = vld [vmem:[#allocation2 + $0x258] sm:$0xff]
    %v553 = vld [vmem:[#allocation2 + $0x260] sm:$0xff]
    %v554 = vld [vmem:[#allocation2 + $0x268] sm:$0xff]
    %v555 = vld [vmem:[#allocation2 + $0x270] sm:$0xff]
    %v556 = vld [vmem:[#allocation2 + $0x278] sm:$0xff]
    %vm557 = vcmask 1045504
    %v558 = vrot.slane %v179, 2
    %v559 = vrot.slane %v183, 2
    %v560 = vsel %vm557, %v558, %v559
    %v561 = vrot.slane %v187, 2
    %v562 = vsel %vm557, %v559, %v561
    %v563 = vrot.slane %v191, 2
    %v564 = vsel %vm557, %v561, %v563
    %v569 = vsel %vm557, %v563, 0.0
    %v570 = vadd.s32 %v243, 2
    %v571 = vadd.s32 %v244, 2
    %v572 = vadd.s32 %v245, 2
    %v573 = vadd.s32 %v246, 2
    %vm574 = vcmp.ge.s32.totalorder %v570, 0
    %vm575 = vcmp.ge.s32.totalorder %v571, 0
    %vm576 = vcmp.ge.s32.totalorder %v572, 0
    %vm577 = vcmp.ge.s32.totalorder %v573, 0
    %vm578 = vcmp.lt.s32.totalorder %v570, 16
    %vm579 = vcmp.lt.s32.totalorder %v571, 16
    %vm580 = vcmp.lt.s32.totalorder %v572, 16
    %vm581 = vcmp.lt.s32.totalorder %v573, 16
    %vm582 = vmand %vm574, %vm578
    %vm583 = vmand %vm575, %vm579
    %vm584 = vmand %vm576, %vm580
    %vm585 = vmand %vm577, %vm581
    %v586 = vsel %vm582, %v560, 0.0
    %v587 = vsel %vm583, %v562, 0.0
    %v588 = vsel %vm584, %v564, 0.0
    %v589 = vsel %vm585, %v569, 0.0
    %590 = vmatpush.msra.mxu0 %v556
    %591 = vmatpush.msra.mxu0 %v555
    %592 = vmatpush.msra.mxu0 %v554
    %593 = vmatpush.msra.mxu0 %v553
    %594 = vmatpush.msra.mxu0 %v552
    %595 = vmatpush.msra.mxu0 %v551
    %596 = vmatpush.msra.mxu0 %v550
    %597 = vmatpush.msra.mxu0 %v549
    %598 = vmatpush.msra.mxu0 %v548
    %599 = vmatpush.msra.mxu0 %v547
    %600 = vmatpush.msra.mxu0 %v546
    %601 = vmatpush.msra.mxu0 %v545
    %602 = vmatpush.msra.mxu0 %v544
    %603 = vmatpush.msra.mxu0 %v543
    %604 = vmatpush.msra.mxu0 %v542
    %605 = vmatpush.msra.mxu0 %v541
    %606 = vmatmul.f32.gmra.mxu0 %v586
    %v607 = vpop.f32.mrf.mxu0
    %v608 = vadd.f32 0.0, %v607
    %609 = vmatmul.f32.gmra.mxu0 %v587
    %v610 = vpop.f32.mrf.mxu0
    %v611 = vadd.f32 0.0, %v610
    %612 = vmatmul.f32.gmra.mxu0 %v588
    %v613 = vpop.f32.mrf.mxu0
    %v614 = vadd.f32 0.0, %v613
    %615 = vmatmul.f32.gmra.mxu0 %v589
    %v616 = vpop.f32.mrf.mxu0
    %v617 = vadd.f32 0.0, %v616
    %618 = vdwg.mxu0
    %v619 = vadd.f32 %v537, %v608
    %v620 = vadd.f32 %v538, %v611
    %v621 = vadd.f32 %v539, %v614
    %v622 = vadd.f32 %v540, %v617
    %v623 = vadd.f32 %v619, %v247
    %v624 = vadd.f32 %v620, %v247
    %v625 = vadd.f32 %v621, %v247
    %v626 = vadd.f32 %v622, %v247
    %v627 = vmax.f32 %v623, 0.0
    %v628 = vmax.f32 %v624, 0.0
    %v629 = vmax.f32 %v625, 0.0
    %v630 = vmax.f32 %v626, 0.0
    %v631 = vld [vmem:[#allocation2 + $0x280] sm:$0xff]
    %v632 = vld [vmem:[#allocation2 + $0x288] sm:$0xff]
    %v633 = vld [vmem:[#allocation2 + $0x290] sm:$0xff]
    %v634 = vld [vmem:[#allocation2 + $0x298] sm:$0xff]
    %v635 = vld [vmem:[#allocation2 + $0x2a0] sm:$0xff]
    %v636 = vld [vmem:[#allocation2 + $0x2a8] sm:$0xff]
    %v637 = vld [vmem:[#allocation2 + $0x2b0] sm:$0xff]
    %v638 = vld [vmem:[#allocation2 + $0x2b8] sm:$0xff]
    %v639 = vld [vmem:[#allocation2 + $0x2c0] sm:$0xff]
    %v640 = vld [vmem:[#allocation2 + $0x2c8] sm:$0xff]
    %v641 = vld [vmem:[#allocation2 + $0x2d0] sm:$0xff]
    %v642 = vld [vmem:[#allocation2 + $0x2d8] sm:$0xff]
    %v643 = vld [vmem:[#allocation2 + $0x2e0] sm:$0xff]
    %v644 = vld [vmem:[#allocation2 + $0x2e8] sm:$0xff]
    %v645 = vld [vmem:[#allocation2 + $0x2f0] sm:$0xff]
    %v646 = vld [vmem:[#allocation2 + $0x2f8] sm:$0xff]
    %v651 = vrot.slane %v180, 7
    %v652 = vrot.slane %v184, 7
    %v653 = vsel %vm319, %v651, %v652
    %v654 = vrot.slane %v188, 7
    %v655 = vsel %vm319, %v652, %v654
    %v656 = vrot.slane %v192, 7
    %v657 = vsel %vm319, %v654, %v656
    %v662 = vsel %vm319, 0.0, %v651
    %v663 = vsel %vm344, %v662, 0.0
    %v664 = vsel %vm345, %v653, 0.0
    %v665 = vsel %vm346, %v655, 0.0
    %v666 = vsel %vm347, %v657, 0.0
    %v667 = vld [vmem:[#allocation2 + $0x300] sm:$0xff]
    %v668 = vld [vmem:[#allocation2 + $0x308] sm:$0xff]
    %v669 = vld [vmem:[#allocation2 + $0x310] sm:$0xff]
    %v670 = vld [vmem:[#allocation2 + $0x318] sm:$0xff]
    %v671 = vld [vmem:[#allocation2 + $0x320] sm:$0xff]
    %v672 = vld [vmem:[#allocation2 + $0x328] sm:$0xff]
    %v673 = vld [vmem:[#allocation2 + $0x330] sm:$0xff]
    %v674 = vld [vmem:[#allocation2 + $0x338] sm:$0xff]
    %v675 = vld [vmem:[#allocation2 + $0x340] sm:$0xff]
    %v676 = vld [vmem:[#allocation2 + $0x348] sm:$0xff]
    %v677 = vld [vmem:[#allocation2 + $0x350] sm:$0xff]
    %v678 = vld [vmem:[#allocation2 + $0x358] sm:$0xff]
    %v679 = vld [vmem:[#allocation2 + $0x360] sm:$0xff]
    %v680 = vld [vmem:[#allocation2 + $0x368] sm:$0xff]
    %v681 = vld [vmem:[#allocation2 + $0x370] sm:$0xff]
    %v682 = vld [vmem:[#allocation2 + $0x378] sm:$0xff]
    %683 = vmatpush.msra.mxu0 %v682
    %684 = vmatpush.msra.mxu0 %v681
    %685 = vmatpush.msra.mxu0 %v680
    %686 = vmatpush.msra.mxu0 %v679
    %687 = vmatpush.msra.mxu0 %v678
    %688 = vmatpush.msra.mxu0 %v677
    %689 = vmatpush.msra.mxu0 %v676
    %690 = vmatpush.msra.mxu0 %v675
    %691 = vmatpush.msra.mxu0 %v674
    %692 = vmatpush.msra.mxu0 %v673
    %693 = vmatpush.msra.mxu0 %v672
    %694 = vmatpush.msra.mxu0 %v671
    %695 = vmatpush.msra.mxu0 %v670
    %696 = vmatpush.msra.mxu0 %v669
    %697 = vmatpush.msra.mxu0 %v668
    %698 = vmatpush.msra.mxu0 %v667
    %699 = vmatmul.f32.gmra.mxu0 %v180
    %v700 = vpop.f32.mrf.mxu0
    %v701 = vadd.f32 0.0, %v700
    %702 = vmatmul.f32.gmra.mxu0 %v184
    %v703 = vpop.f32.mrf.mxu0
    %v704 = vadd.f32 0.0, %v703
    %705 = vmatmul.f32.gmra.mxu0 %v188
    %v706 = vpop.f32.mrf.mxu0
    %v707 = vadd.f32 0.0, %v706
    %708 = vmatmul.f32.gmra.mxu0 %v192
    %v709 = vpop.f32.mrf.mxu0
    %v710 = vadd.f32 0.0, %v709
    %711 = vdwg.mxu0
    %712 = vmatpush.msra.mxu0 %v646
    %713 = vmatpush.msra.mxu0 %v645
    %714 = vmatpush.msra.mxu0 %v644
    %715 = vmatpush.msra.mxu0 %v643
    %716 = vmatpush.msra.mxu0 %v642
    %717 = vmatpush.msra.mxu0 %v641
    %718 = vmatpush.msra.mxu0 %v640
    %719 = vmatpush.msra.mxu0 %v639
    %720 = vmatpush.msra.mxu0 %v638
    %721 = vmatpush.msra.mxu0 %v637
    %722 = vmatpush.msra.mxu0 %v636
    %723 = vmatpush.msra.mxu0 %v635
    %724 = vmatpush.msra.mxu0 %v634
    %725 = vmatpush.msra.mxu0 %v633
    %726 = vmatpush.msra.mxu0 %v632
    %727 = vmatpush.msra.mxu0 %v631
    %728 = vmatmul.f32.gmra.mxu0 %v663
    %v729 = vpop.f32.mrf.mxu0
    %v730 = vadd.f32 %v701, %v729
    %731 = vmatmul.f32.gmra.mxu0 %v664
    %v732 = vpop.f32.mrf.mxu0
    %v733 = vadd.f32 %v704, %v732
    %734 = vmatmul.f32.gmra.mxu0 %v665
    %v735 = vpop.f32.mrf.mxu0
    %v736 = vadd.f32 %v707, %v735
    %737 = vmatmul.f32.gmra.mxu0 %v666
    %v738 = vpop.f32.mrf.mxu0
    %v739 = vadd.f32 %v710, %v738
    %740 = vdwg.mxu0
    %v741 = vld [vmem:[#allocation2 + $0x380] sm:$0xff]
    %v742 = vld [vmem:[#allocation2 + $0x388] sm:$0xff]
    %v743 = vld [vmem:[#allocation2 + $0x390] sm:$0xff]
    %v744 = vld [vmem:[#allocation2 + $0x398] sm:$0xff]
    %v745 = vld [vmem:[#allocation2 + $0x3a0] sm:$0xff]
    %v746 = vld [vmem:[#allocation2 + $0x3a8] sm:$0xff]
    %v747 = vld [vmem:[#allocation2 + $0x3b0] sm:$0xff]
    %v748 = vld [vmem:[#allocation2 + $0x3b8] sm:$0xff]
    %v749 = vld [vmem:[#allocation2 + $0x3c0] sm:$0xff]
    %v750 = vld [vmem:[#allocation2 + $0x3c8] sm:$0xff]
    %v751 = vld [vmem:[#allocation2 + $0x3d0] sm:$0xff]
    %v752 = vld [vmem:[#allocation2 + $0x3d8] sm:$0xff]
    %v753 = vld [vmem:[#allocation2 + $0x3e0] sm:$0xff]
    %v754 = vld [vmem:[#allocation2 + $0x3e8] sm:$0xff]
    %v755 = vld [vmem:[#allocation2 + $0x3f0] sm:$0xff]
    %v756 = vld [vmem:[#allocation2 + $0x3f8] sm:$0xff]
    %v757 = vrot.slane %v180, 1
    %v758 = vrot.slane %v184, 1
    %v759 = vsel %vm475, %v757, %v758
    %v760 = vrot.slane %v188, 1
    %v761 = vsel %vm475, %v758, %v760
    %v762 = vrot.slane %v192, 1
    %v763 = vsel %vm475, %v760, %v762
    %v768 = vsel %vm475, %v762, 0.0
    %v769 = vsel %vm500, %v759, 0.0
    %v770 = vsel %vm501, %v761, 0.0
    %v771 = vsel %vm502, %v763, 0.0
    %v772 = vsel %vm503, %v768, 0.0
    %773 = vmatpush.msra.mxu0 %v756
    %774 = vmatpush.msra.mxu0 %v755
    %775 = vmatpush.msra.mxu0 %v754
    %776 = vmatpush.msra.mxu0 %v753
    %777 = vmatpush.msra.mxu0 %v752
    %778 = vmatpush.msra.mxu0 %v751
    %779 = vmatpush.msra.mxu0 %v750
    %780 = vmatpush.msra.mxu0 %v749
    %781 = vmatpush.msra.mxu0 %v748
    %782 = vmatpush.msra.mxu0 %v747
    %783 = vmatpush.msra.mxu0 %v746
    %784 = vmatpush.msra.mxu0 %v745
    %785 = vmatpush.msra.mxu0 %v744
    %786 = vmatpush.msra.mxu0 %v743
    %787 = vmatpush.msra.mxu0 %v742
    %788 = vmatpush.msra.mxu0 %v741
    %789 = vmatmul.f32.gmra.mxu0 %v769
    %v790 = vpop.f32.mrf.mxu0
    %v791 = vadd.f32 0.0, %v790
    %792 = vmatmul.f32.gmra.mxu0 %v770
    %v793 = vpop.f32.mrf.mxu0
    %v794 = vadd.f32 0.0, %v793
    %795 = vmatmul.f32.gmra.mxu0 %v771
    %v796 = vpop.f32.mrf.mxu0
    %v797 = vadd.f32 0.0, %v796
    %798 = vmatmul.f32.gmra.mxu0 %v772
    %v799 = vpop.f32.mrf.mxu0
    %v800 = vadd.f32 0.0, %v799
    %801 = vdwg.mxu0
    %v802 = vadd.f32 %v730, %v791
    %v803 = vadd.f32 %v733, %v794
    %v804 = vadd.f32 %v736, %v797
    %v805 = vadd.f32 %v739, %v800
    %v806 = vadd.f32 %v802, %v248
    %v807 = vadd.f32 %v803, %v248
    %v808 = vadd.f32 %v804, %v248
    %v809 = vadd.f32 %v805, %v248
    %v810 = vmax.f32 %v806, 0.0
    %v811 = vmax.f32 %v807, 0.0
    %v812 = vmax.f32 %v808, 0.0
    %v813 = vmax.f32 %v809, 0.0
    %v814 = vld [vmem:[#allocation2 + $0x400] sm:$0xff]
    %v815 = vld [vmem:[#allocation2 + $0x408] sm:$0xff]
    %v816 = vld [vmem:[#allocation2 + $0x410] sm:$0xff]
    %v817 = vld [vmem:[#allocation2 + $0x418] sm:$0xff]
    %v818 = vld [vmem:[#allocation2 + $0x420] sm:$0xff]
    %v819 = vld [vmem:[#allocation2 + $0x428] sm:$0xff]
    %v820 = vld [vmem:[#allocation2 + $0x430] sm:$0xff]
    %v821 = vld [vmem:[#allocation2 + $0x438] sm:$0xff]
    %v822 = vld [vmem:[#allocation2 + $0x440] sm:$0xff]
    %v823 = vld [vmem:[#allocation2 + $0x448] sm:$0xff]
    %v824 = vld [vmem:[#allocation2 + $0x450] sm:$0xff]
    %v825 = vld [vmem:[#allocation2 + $0x458] sm:$0xff]
    %v826 = vld [vmem:[#allocation2 + $0x460] sm:$0xff]
    %v827 = vld [vmem:[#allocation2 + $0x468] sm:$0xff]
    %v828 = vld [vmem:[#allocation2 + $0x470] sm:$0xff]
    %v829 = vld [vmem:[#allocation2 + $0x478] sm:$0xff]
    %v834 = vrot.slane %v810, 7
    %v835 = vrot.slane %v811, 7
    %v836 = vsel %vm319, %v834, %v835
    %v837 = vrot.slane %v812, 7
    %v838 = vsel %vm319, %v835, %v837
    %v839 = vrot.slane %v813, 7
    %v840 = vsel %vm319, %v837, %v839
    %v845 = vsel %vm319, 0.0, %v834
    %v846 = vsel %vm344, %v845, 0.0
    %v847 = vsel %vm345, %v836, 0.0
    %v848 = vsel %vm346, %v838, 0.0
    %v849 = vsel %vm347, %v840, 0.0
    %v850 = vld [vmem:[#allocation2 + $0x480] sm:$0xff]
    %v851 = vld [vmem:[#allocation2 + $0x488] sm:$0xff]
    %v852 = vld [vmem:[#allocation2 + $0x490] sm:$0xff]
    %v853 = vld [vmem:[#allocation2 + $0x498] sm:$0xff]
    %v854 = vld [vmem:[#allocation2 + $0x4a0] sm:$0xff]
    %v855 = vld [vmem:[#allocation2 + $0x4a8] sm:$0xff]
    %v856 = vld [vmem:[#allocation2 + $0x4b0] sm:$0xff]
    %v857 = vld [vmem:[#allocation2 + $0x4b8] sm:$0xff]
    %v858 = vld [vmem:[#allocation2 + $0x4c0] sm:$0xff]
    %v859 = vld [vmem:[#allocation2 + $0x4c8] sm:$0xff]
    %v860 = vld [vmem:[#allocation2 + $0x4d0] sm:$0xff]
    %v861 = vld [vmem:[#allocation2 + $0x4d8] sm:$0xff]
    %v862 = vld [vmem:[#allocation2 + $0x4e0] sm:$0xff]
    %v863 = vld [vmem:[#allocation2 + $0x4e8] sm:$0xff]
    %v864 = vld [vmem:[#allocation2 + $0x4f0] sm:$0xff]
    %v865 = vld [vmem:[#allocation2 + $0x4f8] sm:$0xff]
    %866 = vmatpush.msra.mxu0 %v865
    %867 = vmatpush.msra.mxu0 %v864
    %868 = vmatpush.msra.mxu0 %v863
    %869 = vmatpush.msra.mxu0 %v862
    %870 = vmatpush.msra.mxu0 %v861
    %871 = vmatpush.msra.mxu0 %v860
    %872 = vmatpush.msra.mxu0 %v859
    %873 = vmatpush.msra.mxu0 %v858
    %874 = vmatpush.msra.mxu0 %v857
    %875 = vmatpush.msra.mxu0 %v856
    %876 = vmatpush.msra.mxu0 %v855
    %877 = vmatpush.msra.mxu0 %v854
    %878 = vmatpush.msra.mxu0 %v853
    %879 = vmatpush.msra.mxu0 %v852
    %880 = vmatpush.msra.mxu0 %v851
    %881 = vmatpush.msra.mxu0 %v850
    %882 = vmatmul.f32.gmra.mxu0 %v810
    %v883 = vpop.f32.mrf.mxu0
    %v884 = vadd.f32 0.0, %v883
    %885 = vmatmul.f32.gmra.mxu0 %v811
    %v886 = vpop.f32.mrf.mxu0
    %v887 = vadd.f32 0.0, %v886
    %888 = vmatmul.f32.gmra.mxu0 %v812
    %v889 = vpop.f32.mrf.mxu0
    %v890 = vadd.f32 0.0, %v889
    %891 = vmatmul.f32.gmra.mxu0 %v813
    %v892 = vpop.f32.mrf.mxu0
    %v893 = vadd.f32 0.0, %v892
    %894 = vdwg.mxu0
    %895 = vmatpush.msra.mxu0 %v829
    %896 = vmatpush.msra.mxu0 %v828
    %897 = vmatpush.msra.mxu0 %v827
    %898 = vmatpush.msra.mxu0 %v826
    %899 = vmatpush.msra.mxu0 %v825
    %900 = vmatpush.msra.mxu0 %v824
    %901 = vmatpush.msra.mxu0 %v823
    %902 = vmatpush.msra.mxu0 %v822
    %903 = vmatpush.msra.mxu0 %v821
    %904 = vmatpush.msra.mxu0 %v820
    %905 = vmatpush.msra.mxu0 %v819
    %906 = vmatpush.msra.mxu0 %v818
    %907 = vmatpush.msra.mxu0 %v817
    %908 = vmatpush.msra.mxu0 %v816
    %909 = vmatpush.msra.mxu0 %v815
    %910 = vmatpush.msra.mxu0 %v814
    %911 = vmatmul.f32.gmra.mxu0 %v846
    %v912 = vpop.f32.mrf.mxu0
    %v913 = vadd.f32 %v884, %v912
    %914 = vmatmul.f32.gmra.mxu0 %v847
    %v915 = vpop.f32.mrf.mxu0
    %v916 = vadd.f32 %v887, %v915
    %917 = vmatmul.f32.gmra.mxu0 %v848
    %v918 = vpop.f32.mrf.mxu0
    %v919 = vadd.f32 %v890, %v918
    %920 = vmatmul.f32.gmra.mxu0 %v849
    %v921 = vpop.f32.mrf.mxu0
    %v922 = vadd.f32 %v893, %v921
    %923 = vdwg.mxu0
    %v924 = vld [vmem:[#allocation2 + $0x500] sm:$0xff]
    %v925 = vld [vmem:[#allocation2 + $0x508] sm:$0xff]
    %v926 = vld [vmem:[#allocation2 + $0x510] sm:$0xff]
    %v927 = vld [vmem:[#allocation2 + $0x518] sm:$0xff]
    %v928 = vld [vmem:[#allocation2 + $0x520] sm:$0xff]
    %v929 = vld [vmem:[#allocation2 + $0x528] sm:$0xff]
    %v930 = vld [vmem:[#allocation2 + $0x530] sm:$0xff]
    %v931 = vld [vmem:[#allocation2 + $0x538] sm:$0xff]
    %v932 = vld [vmem:[#allocation2 + $0x540] sm:$0xff]
    %v933 = vld [vmem:[#allocation2 + $0x548] sm:$0xff]
    %v934 = vld [vmem:[#allocation2 + $0x550] sm:$0xff]
    %v935 = vld [vmem:[#allocation2 + $0x558] sm:$0xff]
    %v936 = vld [vmem:[#allocation2 + $0x560] sm:$0xff]
    %v937 = vld [vmem:[#allocation2 + $0x568] sm:$0xff]
    %v938 = vld [vmem:[#allocation2 + $0x570] sm:$0xff]
    %v939 = vld [vmem:[#allocation2 + $0x578] sm:$0xff]
    %v940 = vrot.slane %v810, 1
    %v941 = vrot.slane %v811, 1
    %v942 = vsel %vm475, %v940, %v941
    %v943 = vrot.slane %v812, 1
    %v944 = vsel %vm475, %v941, %v943
    %v945 = vrot.slane %v813, 1
    %v946 = vsel %vm475, %v943, %v945
    %v951 = vsel %vm475, %v945, 0.0
    %v952 = vsel %vm500, %v942, 0.0
    %v953 = vsel %vm501, %v944, 0.0
    %v954 = vsel %vm502, %v946, 0.0
    %v955 = vsel %vm503, %v951, 0.0
    %956 = vmatpush.msra.mxu0 %v939
    %957 = vmatpush.msra.mxu0 %v938
    %958 = vmatpush.msra.mxu0 %v937
    %959 = vmatpush.msra.mxu0 %v936
    %960 = vmatpush.msra.mxu0 %v935
    %961 = vmatpush.msra.mxu0 %v934
    %962 = vmatpush.msra.mxu0 %v933
    %963 = vmatpush.msra.mxu0 %v932
    %964 = vmatpush.msra.mxu0 %v931
    %965 = vmatpush.msra.mxu0 %v930
    %966 = vmatpush.msra.mxu0 %v929
    %967 = vmatpush.msra.mxu0 %v928
    %968 = vmatpush.msra.mxu0 %v927
    %969 = vmatpush.msra.mxu0 %v926
    %970 = vmatpush.msra.mxu0 %v925
    %971 = vmatpush.msra.mxu0 %v924
    %972 = vmatmul.f32.gmra.mxu0 %v952
    %v973 = vpop.f32.mrf.mxu0
    %v974 = vadd.f32 0.0, %v973
    %975 = vmatmul.f32.gmra.mxu0 %v953
    %v976 = vpop.f32.mrf.mxu0
    %v977 = vadd.f32 0.0, %v976
    %978 = vmatmul.f32.gmra.mxu0 %v954
    %v979 = vpop.f32.mrf.mxu0
    %v980 = vadd.f32 0.0, %v979
    %981 = vmatmul.f32.gmra.mxu0 %v955
    %v982 = vpop.f32.mrf.mxu0
    %v983 = vadd.f32 0.0, %v982
    %984 = vdwg.mxu0
    %v985 = vadd.f32 %v913, %v974
    %v986 = vadd.f32 %v916, %v977
    %v987 = vadd.f32 %v919, %v980
    %v988 = vadd.f32 %v922, %v983
    %v989 = vadd.f32 %v985, %v249
    %v990 = vadd.f32 %v986, %v249
    %v991 = vadd.f32 %v987, %v249
    %v992 = vadd.f32 %v988, %v249
    %v993 = vmax.f32 %v989, 0.0
    %v994 = vmax.f32 %v990, 0.0
    %v995 = vmax.f32 %v991, 0.0
    %v996 = vmax.f32 %v992, 0.0
    %v997 = vadd.f32 %v178, %v627
    %v998 = vadd.f32 %v182, %v628
    %v999 = vadd.f32 %v186, %v629
    %v1000 = vadd.f32 %v190, %v630
    %v1001 = vadd.f32 %v993, %v181
    %v1002 = vadd.f32 %v994, %v185
    %v1003 = vadd.f32 %v995, %v189
    %v1004 = vadd.f32 %v996, %v193
    %1005 = vst [vmem:[%s3] sm:$0xff] %v997
    %1006 = vst [vmem:[%s3 + $0x8] sm:$0xff] %v1001
    %1007 = vst [vmem:[%s3 + $0x10] sm:$0xff] %v998
    %1008 = vst [vmem:[%s3 + $0x18] sm:$0xff] %v1002
    %1009 = vst [vmem:[%s3 + $0x20] sm:$0xff] %v999
    %1010 = vst [vmem:[%s3 + $0x28] sm:$0xff] %v1003
    %1011 = vst [vmem:[%s3 + $0x30] sm:$0xff] %v1000
    %1012 = vst [vmem:[%s3 + $0x38] sm:$0xff] %v1004
    // Predicated region
    $region18: #{inception_a_forward.1} parent=1 // pred_check
      _
    $region19: #{inception_a_forward.1} parent=1 // pred_check_branch
      %1014 = sbr.rel (0) target = $region21
    $region20: #{inception_a_forward.1} parent=1 // pred_region
      _
    $region21: #{inception_a_forward.1} parent=1 // pred_fallthru
      _
    // Predicated region
    $region22: #{inception_a_forward.1} parent=1 // pred_check
      _
    $region23: #{inception_a_forward.1} parent=1 // pred_check_branch
      %1016 = sbr.rel (0) target = $region25
    $region24: #{inception_a_forward.1} parent=1 // pred_region
      _
    $region25: #{inception_a_forward.1} parent=1 // pred_fallthru
      _
    %1017 = vsyncpa [#allocation3], 1

</llo_original>
